<compile_context>
chip_gen: v7x
topology: tpu7x:2x2x1
jax: 0.10.0
libtpu: 0.0.40
codegen_flags: <defaults>
</compile_context>

<pallas_src>
import functools
import math

import jax
import jax.numpy as jnp
from jax import lax
from jax.experimental import pallas as pl
from jax.experimental.pallas import tpu as pltpu

_LANE = 128
_SUBLANE = 8


# ----------------------------- Pallas kernels ---------------------------------
def _rmsnorm_kernel(x_ref, w_ref, o_ref, *, eps):
    # x_ref: (TR, D)  rows of the flattened activation, D on lanes
    # w_ref: (1, D)   RMSNorm weights (resident, broadcast over rows)
    x = x_ref[...].astype(jnp.float32)
    var = jnp.mean(x * x, axis=-1, keepdims=True)            # XLU lane reduction
    inv = lax.rsqrt(var + eps)                                # EUP rsqrt
    o_ref[...] = (w_ref[...].astype(jnp.float32) * x * inv).astype(o_ref.dtype)


def _rmsnorm_packed_kernel(x_ref, w_ref, g_ref, o_ref, *, eps):
    # Lane-packed variant: k logical rows of width D share one 128-lane row.
    # x_ref: (TR, 128), w_ref: (1, 128), g_ref: (128, 128) block-diag 1/D matrix.
    x = x_ref[...].astype(jnp.float32)
    # var[r, j] = mean(x^2) over lane j's logical row (group j // D); lane-dense MXU op.
    var = jnp.dot(x * x, g_ref[...], preferred_element_type=jnp.float32)
    inv = lax.rsqrt(var + eps)
    o_ref[...] = (w_ref[...].astype(jnp.float32) * x * inv).astype(o_ref.dtype)


# ----------------------------- tiling helpers ----------------------------------
def _vmem_budget():
    """Return (vmem_limit_bytes, pipeline_budget_bytes) sized against this chip."""
    try:
        vmem = int(pltpu.get_tpu_info().vmem_capacity_bytes)
    except Exception:
        vmem = 64 << 20  # v7x per-TensorCore size; conservative on v5e/v6e (128 MiB)
    limit = min(48 << 20, (vmem * 3) // 5)   # scoped VMEM limit we request
    budget = (limit * 7) // 10               # leave headroom for compiler internals
    return int(limit), int(budget)


def _pick_row_tile(rows, width, itemsize, budget_bytes):
    """Largest sublane-multiple row tile whose pipeline footprint fits the budget.

    Per-row footprint: 2x input + 2x output buffers in the I/O dtype, plus ~3
    f32-wide in-kernel temporaries (working copy, x*x, pre-cast result).
    """
    per_row = width * (4 * itemsize + 3 * 4)
    tr = budget_bytes // per_row
    tr = max(_SUBLANE, (tr // _SUBLANE) * _SUBLANE)
    if tr >= rows:
        return int(rows)   # single block; full-extent dims are exempt from 8-divisibility
    return int(tr)


# ----------------------------- wrapper ------------------------------------------
def rmsnorm_forward(x, weight, eps=1e-5):
    """weight * x * rsqrt(mean(x**2, axis=-1, keepdims=True) + eps), feature dim last."""
    orig_shape = x.shape
    d_model = orig_shape[-1]
    rows = int(math.prod(orig_shape[:-1]))

    x2 = x.reshape(rows, d_model)
    weight = weight.reshape(d_model)

    # Lane-pack small feature dims so loads/stores are full 128-lane, unmasked.
    k = 1
    if d_model < _LANE and _LANE % d_model == 0 and rows % (_LANE // d_model) == 0:
        k = _LANE // d_model
    width = k * d_model
    rows_p = rows // k

    vmem_limit, budget = _vmem_budget()
    tr = _pick_row_tile(rows_p, width, x2.dtype.itemsize, budget)
    grid = (pl.cdiv(rows_p, tr),)

    compiler_params = pltpu.CompilerParams(
        # Independent row tiles -> shard across TensorCores (v7x megacore).
        dimension_semantics=("parallel",),
        vmem_limit_bytes=vmem_limit,
    )

    if k == 1:
        kernel = functools.partial(_rmsnorm_kernel, eps=float(eps))
        in_specs = [
            pl.BlockSpec((tr, width), lambda i: (i, 0)),     # row tile
            pl.BlockSpec((1, width), lambda i: (0, 0)),      # weights (resident)
        ]
        args = (x2, weight.reshape(1, width))
    else:
        xp = x2.reshape(rows_p, width)                       # contiguous re-view
        wp = jnp.tile(weight, (k,)).reshape(1, width)        # wp[j] = weight[j % D]
        gid = jnp.arange(width, dtype=jnp.int32) // d_model
        gmat = (gid[:, None] == gid[None, :]).astype(jnp.float32) / d_model
        kernel = functools.partial(_rmsnorm_packed_kernel, eps=float(eps))
        in_specs = [
            pl.BlockSpec((tr, width), lambda i: (i, 0)),     # packed row tile
            pl.BlockSpec((1, width), lambda i: (0, 0)),      # packed weights (resident)
            pl.BlockSpec((width, width), lambda i: (0, 0)),  # averaging matrix (resident)
        ]
        args = (xp, wp, gmat)

    out = pl.pallas_call(
        kernel,
        out_shape=jax.ShapeDtypeStruct((rows_p, width), x.dtype),
        grid_spec=pltpu.PrefetchScalarGridSpec(
            num_scalar_prefetch=0,
            grid=grid,
            in_specs=in_specs,
            out_specs=pl.BlockSpec((tr, width), lambda i: (i, 0)),
        ),
        compiler_params=compiler_params,
    )(*args)

    return out.reshape(orig_shape)


# ----------------------------- pure-JAX reference --------------------------------
def rmsnorm_ref(x, weight, eps=1e-5):
    return weight * x * lax.rsqrt(jnp.mean(x * x, axis=-1, keepdims=True) + eps)


# ----------------------------- main -----------------------------------------------
if __name__ == "__main__":
    B, L, d_model = 2, 8, 32

    key = jax.random.PRNGKey(0)
    kx, kw = jax.random.split(key)
    x = jax.random.normal(kx, (B, L, d_model), jnp.float32)
    # Parameter is initialised to ones in the module; perturb so the multiply is exercised.
    weight = 1.0 + 0.1 * jax.random.normal(kw, (d_model,), jnp.float32)

    out = jax.jit(rmsnorm_forward)(x, weight)
    out = jax.block_until_ready(out)

    ref = rmsnorm_ref(x, weight)
    assert out.shape == (B, L, d_model)
    assert jnp.allclose(out, ref, rtol=1e-5, atol=1e-5), (
        f"max abs diff {jnp.max(jnp.abs(out - ref))}"
    )
    print("KERNEL_OK")
</pallas_src>

<mosaic_0001>
module attributes {stable_mosaic.version = 11 : i64} {
  func.func @_rmsnorm_packed_kernel(%arg0: i32, %arg1: memref<4x128xf32, #tpu.memory_space<vmem>>, %arg2: memref<1x128xf32, #tpu.memory_space<vmem>>, %arg3: memref<128x128xf32, #tpu.memory_space<vmem>>, %arg4: memref<4x128xf32, #tpu.memory_space<vmem>>) attributes {dimension_semantics = [#tpu.dimension_semantics<parallel>], iteration_bounds = array<i64: 1>, scalar_prefetch = 0 : i64, scratch_operands = 0 : i64, tpu.core_type = #tpu.core_type<tc>, window_params = [{transform_indices = @transform_0, window_bounds = array<i64: 4, 128>}, {pipeline_mode = #tpu.pipeline_mode<synchronous>, transform_indices = @transform_1, window_bounds = array<i64: 1, 128>}, {pipeline_mode = #tpu.pipeline_mode<synchronous>, transform_indices = @transform_2, window_bounds = array<i64: 128, 128>}, {transform_indices = @transform_3, window_bounds = array<i64: 4, 128>}]} {
    %c0 = arith.constant 0 : index
    %c0_0 = arith.constant 0 : index
    %0 = vector.load %arg1[%c0, %c0_0] : memref<4x128xf32, #tpu.memory_space<vmem>>, vector<4x128xf32>
    %1 = arith.mulf %0, %0 : vector<4x128xf32>
    %c0_1 = arith.constant 0 : index
    %c0_2 = arith.constant 0 : index
    %2 = vector.load %arg3[%c0_1, %c0_2] : memref<128x128xf32, #tpu.memory_space<vmem>>, vector<128x128xf32>
    %cst = arith.constant dense<0.000000e+00> : vector<4x128xf32>
    %3 = tpu.matmul %1, %2, %cst {dimension_numbers = #tpu.dot_dimension_numbers<[1], [0], [0], [1], [0, 0, 1, 1], [], []>} : vector<4x128xf32>, vector<128x128xf32>, vector<4x128xf32> -> vector<4x128xf32>
    %cst_3 = arith.constant 9.99999974E-6 : f32
    %4 = vector.broadcast %cst_3 : f32 to vector<4x128xf32>
    %5 = arith.addf %3, %4 : vector<4x128xf32>
    %6 = math.rsqrt %5 : vector<4x128xf32>
    %c0_4 = arith.constant 0 : index
    %c0_5 = arith.constant 0 : index
    %7 = vector.load %arg2[%c0_4, %c0_5] : memref<1x128xf32, #tpu.memory_space<vmem>>, vector<1x128xf32>
    %8 = vector.broadcast %7 : vector<1x128xf32> to vector<4x128xf32>
    %9 = arith.mulf %8, %0 : vector<4x128xf32>
    %10 = arith.mulf %9, %6 : vector<4x128xf32>
    %c0_6 = arith.constant 0 : index
    %c0_7 = arith.constant 0 : index
    %11 = vector.load %arg4[%c0_6, %c0_7] : memref<4x128xf32, #tpu.memory_space<vmem>>, vector<4x128xf32>
    tpu.vector_store %arg4[%c0_6, %c0_7], %10 {strides = array<i32>} : memref<4x128xf32, #tpu.memory_space<vmem>>, vector<4x128xf32>,
    return
  }
  func.func @transform_0(%arg0: i32) -> (i32, i32) {
    %c0_i32 = arith.constant 0 : i32
    %c0_i32_0 = arith.constant 0 : i32
    return %arg0, %c0_i32 : i32, i32
  }
  func.func @transform_1(%arg0: i32) -> (i32, i32) {
    %c0_i32 = arith.constant 0 : i32
    %c0_i32_0 = arith.constant 0 : i32
    %c0_i32_1 = arith.constant 0 : i32
    return %c0_i32, %c0_i32_0 : i32, i32
  }
  func.func @transform_2(%arg0: i32) -> (i32, i32) {
    %c0_i32 = arith.constant 0 : i32
    %c0_i32_0 = arith.constant 0 : i32
    %c0_i32_1 = arith.constant 0 : i32
    return %c0_i32, %c0_i32_0 : i32, i32
  }
  func.func @transform_3(%arg0: i32) -> (i32, i32) {
    %c0_i32 = arith.constant 0 : i32
    %c0_i32_0 = arith.constant 0 : i32
    return %arg0, %c0_i32 : i32, i32
  }
}

</mosaic_0001>

<llo_original>
// kernel: tile.8
$region0: #{tile.8}
  #allocation0 [shape = 's32[1]{0}', space=sflag, size = 0x4, scoped, tag = 'scoped memory for tile.8']
  %s0 = inlined_call_operand.vmem [shape: f32[32], index: 0, kind: input, shape index: {}]
  %s1 = inlined_call_operand.vmem [shape: f32[4,32], index: 1, kind: output, shape index: {}]
  // Predicated region
  $region2: #{tile.8} parent=0 // pred_check
    _
  $region3: #{tile.8} parent=0 // pred_check_branch
    %3 = sbr.rel (0) target = $region5
  $region4: #{tile.8} parent=0 // pred_region
    _
  $region5: #{tile.8} parent=0 // pred_fallthru
    _
  %v4 = vld [vmem:[%s0] ss:$0 sm:$0xff]
  %5 = vst [vmem:[%s1] sm:$0xf] %v4

// kernel: tile.9
$region0: #{tile.9}
  %s0 = inlined_call_operand.vmem [shape: f32[4,32], index: 0, kind: input, shape index: {}]
  %s1 = inlined_call_operand.vmem [shape: f32[1,128], index: 1, kind: output, shape index: {}]
  $region1: #{tile.9} parent=0
    #allocation0 [shape = 'u8[4096]{0}', space=vmem, size = 0x1000, scoped, tag = 'scoped mem for output reshape']
    #allocation1 [shape = 'u8[4096]{0}', space=vmem, size = 0x1000, scoped, tag = 'scoped mem for input reshape']
    %s3 = sshllo.u32 0, 4
    %v4 = vld [vmem:[%s0] sm:%s3]
    %5 = vst [vmem:[#allocation1] sm:%s3] %v4
    %v6 = vld [vmem:[#allocation1] sm:$0x1]
    %vm7 = vcmask 261120
    %8 = vst.msk [vmem:[#allocation0] sm:$0x1] %vm7, %v6
    %s9 = scalar_lea.vmem [#allocation1], 3
    %v10 = vld [vmem:[%s9] sm:$0x1]
    %11 = vrot.lane.b32.xlu0 %v10, 96
    %v12 = vpop.permute.xlu0 %11
    %vm13 = vcmask 1048320
    %14 = vst.msk [vmem:[#allocation0] sm:$0x1] %vm13, %v12
    %s15 = scalar_lea.vmem [#allocation1], 2
    %v16 = vld [vmem:[%s15] sm:$0x1]
    %17 = vrot.lane.b32.xlu0 %v16, 64
    %v18 = vpop.permute.xlu0 %17
    %vm19 = vcmask 785920
    %20 = vst.msk [vmem:[#allocation0] sm:$0x1] %vm19, %v18
    %s21 = scalar_lea.vmem [#allocation1], 1
    %v22 = vld [vmem:[%s21] sm:$0x1]
    %23 = vrot.lane.b32.xlu0 %v22, 32
    %v24 = vpop.permute.xlu0 %23
    %vm25 = vcmask 523520
    %26 = vst.msk [vmem:[#allocation0] sm:$0x1] %vm25, %v24
    %s28 = sshllo.u32 0, 1
    %v30 = vld [vmem:[#allocation0] sm:%s28]
    %s31 = sshllo.u32 0, 1
    %32 = vst [vmem:[%s1] sm:%s31] %v30

// kernel: rmsnorm_forward.1
$region0: #{rmsnorm_forward.1}
  #allocation0 [shape = 'u32[]', space=smem, size = 0x4, offset = 0x4, fixed_abs, tag = 'smem constant byte address 0x4 - core index']
  #allocation1 [shape = 'u32[144,128]{1,0:T(1,128)}', space=vmem, size = 0x12000, scoped, tag = 'internal scratch']
  %s0 = inlined_call_operand.vmem [shape: f32[4,128], index: 0, kind: input, shape index: {}]
  %s1 = inlined_call_operand.vmem [shape: f32[1,128], index: 1, kind: input, shape index: {}]
  %s2 = inlined_call_operand.vmem [shape: f32[128,128], index: 2, kind: input, shape index: {}]
  %s3 = inlined_call_operand.vmem [shape: f32[4,128], index: 3, kind: output, shape index: {}]
  %s4 = sld [smem:[#allocation0]]
  $region22: #{rmsnorm_forward.1} parent=0
    _
  %s6 = ssub.s32 1, %s4
  %s7 = scalar_select 0, %s6, %s4
  // Predicated region
  $region2: #{rmsnorm_forward.1} parent=0 // pred_check
    _
  $region3: #{rmsnorm_forward.1} parent=0 // pred_check_branch
    %9 = sbr.rel (0) target = $region5
  $region4: #{rmsnorm_forward.1} parent=0 // pred_region
    _
  $region5: #{rmsnorm_forward.1} parent=0 // pred_fallthru
    _
  // Predicated region
  $region6: #{rmsnorm_forward.1} parent=0 // pred_check
    _
  $region7: #{rmsnorm_forward.1} parent=0 // pred_check_branch
    %11 = sbr.rel (0) target = $region9
  $region8: #{rmsnorm_forward.1} parent=0 // pred_region
    _
  $region9: #{rmsnorm_forward.1} parent=0 // pred_fallthru
    _
  // Predicated region
  $region10: #{rmsnorm_forward.1} parent=0 // pred_check
    _
  $region11: #{rmsnorm_forward.1} parent=0 // pred_check_branch
    %13 = sbr.rel (0) target = $region13
  $region12: #{rmsnorm_forward.1} parent=0 // pred_region
    _
  $region13: #{rmsnorm_forward.1} parent=0 // pred_fallthru
    _
  %v14 = vld [vmem:[%s0] sm:$0xf]
  %v15 = vmul.f32 %v14, %v14
  %v16 = vld [vmem:[%s2] sm:$0xff]
  %v17 = vld [vmem:[%s2 + $0x8] sm:$0xff]
  %v18 = vld [vmem:[%s2 + $0x10] sm:$0xff]
  %v19 = vld [vmem:[%s2 + $0x18] sm:$0xff]
  %v20 = vld [vmem:[%s2 + $0x20] sm:$0xff]
  %v21 = vld [vmem:[%s2 + $0x28] sm:$0xff]
  %v22 = vld [vmem:[%s2 + $0x30] sm:$0xff]
  %v23 = vld [vmem:[%s2 + $0x38] sm:$0xff]
  %v24 = vld [vmem:[%s2 + $0x40] sm:$0xff]
  %v25 = vld [vmem:[%s2 + $0x48] sm:$0xff]
  %v26 = vld [vmem:[%s2 + $0x50] sm:$0xff]
  %v27 = vld [vmem:[%s2 + $0x58] sm:$0xff]
  %v28 = vld [vmem:[%s2 + $0x60] sm:$0xff]
  %v29 = vld [vmem:[%s2 + $0x68] sm:$0xff]
  %v30 = vld [vmem:[%s2 + $0x70] sm:$0xff]
  %v31 = vld [vmem:[%s2 + $0x78] sm:$0xff]
  %32 = vmatprep.subr.mxu0 0.0
  %33 = vmatpush1.msra.mxu0 %v16
  %34 = vmatprep.subr.mxu0 0.0
  %35 = vmatpush1.msra.mxu0 %v17
  %36 = vmatprep.subr.mxu0 0.0
  %37 = vmatpush1.msra.mxu0 %v18
  %38 = vmatprep.subr.mxu0 0.0
  %39 = vmatpush1.msra.mxu0 %v19
  %40 = vmatprep.subr.mxu0 0.0
  %41 = vmatpush1.msra.mxu0 %v20
  %42 = vmatprep.subr.mxu0 0.0
  %43 = vmatpush1.msra.mxu0 %v21
  %44 = vmatprep.subr.mxu0 0.0
  %45 = vmatpush1.msra.mxu0 %v22
  %46 = vmatprep.subr.mxu0 0.0
  %47 = vmatpush1.msra.mxu0 %v23
  %48 = vmatprep.subr.mxu0 0.0
  %49 = vmatpush1.msra.mxu0 %v24
  %50 = vmatprep.subr.mxu0 0.0
  %51 = vmatpush1.msra.mxu0 %v25
  %52 = vmatprep.subr.mxu0 0.0
  %53 = vmatpush1.msra.mxu0 %v26
  %54 = vmatprep.subr.mxu0 0.0
  %55 = vmatpush1.msra.mxu0 %v27
  %56 = vmatprep.subr.mxu0 0.0
  %57 = vmatpush1.msra.mxu0 %v28
  %58 = vmatprep.subr.mxu0 0.0
  %59 = vmatpush1.msra.mxu0 %v29
  %60 = vmatprep.subr.mxu0 0.0
  %61 = vmatpush1.msra.mxu0 %v30
  %62 = vmatprep.subr.mxu0 0.0
  %63 = vmatpush1.msra.mxu0 %v31
  %64 = vmatprep.subr.mxu0 0.0
  %65 = vmatpush1.msra.mxu0 0.0
  %66 = vmatprep.subr.mxu0 0.0
  %67 = vmatpush1.msra.mxu0 0.0
  %68 = vmatprep.subr.mxu0 0.0
  %69 = vmatpush1.msra.mxu0 0.0
  %70 = vmatprep.subr.mxu0 0.0
  %71 = vmatpush1.msra.mxu0 0.0
  %72 = vmatprep.subr.mxu0 0.0
  %73 = vmatpush1.msra.mxu0 0.0
  %74 = vmatprep.subr.mxu0 0.0
  %75 = vmatpush1.msra.mxu0 0.0
  %76 = vmatprep.subr.mxu0 0.0
  %77 = vmatpush1.msra.mxu0 0.0
  %78 = vmatprep.subr.mxu0 0.0
  %79 = vmatpush1.msra.mxu0 0.0
  %80 = vmatprep.subr.mxu0 0.0
  %81 = vmatpush1.msra.mxu0 0.0
  %82 = vmatprep.subr.mxu0 0.0
  %83 = vmatpush1.msra.mxu0 0.0
  %84 = vmatprep.subr.mxu0 0.0
  %85 = vmatpush1.msra.mxu0 0.0
  %86 = vmatprep.subr.mxu0 0.0
  %87 = vmatpush1.msra.mxu0 0.0
  %88 = vmatprep.subr.mxu0 0.0
  %89 = vmatpush1.msra.mxu0 0.0
  %90 = vmatprep.subr.mxu0 0.0
  %91 = vmatpush1.msra.mxu0 0.0
  %92 = vmatprep.subr.mxu0 0.0
  %93 = vmatpush1.msra.mxu0 0.0
  %94 = vmatprep.subr.mxu0 0.0
  %95 = vmatpush1.msra.mxu0 0.0
  %96 = vmatprep.mubr.f32.mxu0 0.0
  %97 = vmatmul.mubr.f32.gmra.mrb[0].mxu0 %v15
  %v98 = vpop.f32.mrb[0].mxu0
  %v99 = vadd.f32 1e-05, %v98
  %v100 = vpop.f32.mrb[0].mxu0
  %101 = vdwg.mxu0
  %v102 = vrsqrt.pop %v99
  %v103 = vld [vmem:[%s1] sm:$0x1]
  %v105 = vlaneseq
  %v106 = vshrl.u32 %v105, 7
  %v107 = vsub.s32 0, %v106
  %v108 = vrot.slane %v103, %v107
  %v110 = vmul.f32 %v108, %v14
  %v111 = vmul.f32 %v110, %v102
  %112 = vst [vmem:[%s3] sm:$0xf] %v111
  // Predicated region
  $region14: #{rmsnorm_forward.1} parent=0 // pred_check
    _
  $region15: #{rmsnorm_forward.1} parent=0 // pred_check_branch
    %114 = sbr.rel (0) target = $region17
  $region16: #{rmsnorm_forward.1} parent=0 // pred_region
    _
  $region17: #{rmsnorm_forward.1} parent=0 // pred_fallthru
    _
  // Predicated region
  $region18: #{rmsnorm_forward.1} parent=0 // pred_check
    _
  $region19: #{rmsnorm_forward.1} parent=0 // pred_check_branch
    %116 = sbr.rel (0) target = $region21
  $region20: #{rmsnorm_forward.1} parent=0 // pred_region
    _
  $region21: #{rmsnorm_forward.1} parent=0 // pred_fallthru
    _

</llo_original>
